<compile_context>
chip_gen: v6e
topology: v6e:2x2x1
jax: 0.10.0
libtpu: 0.0.40
codegen_flags: <defaults>
</compile_context>

<pallas_src>
import jax
import jax.numpy as jnp
from jax.experimental import pallas as pl
from jax.experimental.pallas import tpu as pltpu

NAME_TILE = (8, 128)  # (sublane, lane) — one int32 vreg tile, layout-aligned


def _encode_name(name: str) -> jnp.ndarray:
    """Deterministically encode a python string into an int32 (8,128) tile."""
    codes = [ord(c) for c in name]
    assert len(codes) <= NAME_TILE[0] * NAME_TILE[1], "name too long"
    codes = codes + [0] * (NAME_TILE[0] * NAME_TILE[1] - len(codes))
    return jnp.asarray(codes, dtype=jnp.int32).reshape(NAME_TILE)


def _decode_name(arr) -> str:
    # NOTE: forces a device->host sync; test-harness only, never on a hot path.
    flat = [int(v) for v in jnp.ravel(arr).tolist()]
    chars = []
    for v in flat:
        if v == 0:  # NUL-terminated: names containing chr(0) would truncate.
            break
        chars.append(chr(v))
    return "".join(chars)


def _str_module_kernel(name_ref, out_ref):
    # Pass-through of the stored constant: out = self.str
    # With input_output_aliases={0: 0} the output HBM buffer IS the input
    # buffer, so this single-vreg store is the only (trivial) work.
    out_ref[...] = name_ref[...]


# Grid-free pallas_call constructed once at import time: the whole (8,128)
# int32 tile is a single VMEM-resident block. No pipeline machinery, no
# double-buffering, no compiler params. Output aliases the donated input.
_str_module_pallas = pl.pallas_call(
    _str_module_kernel,
    out_shape=jax.ShapeDtypeStruct(NAME_TILE, jnp.int32),
    in_specs=[pl.BlockSpec(memory_space=pltpu.MemorySpace.VMEM)],
    out_specs=pl.BlockSpec(memory_space=pltpu.MemorySpace.VMEM),
    input_output_aliases={0: 0},
)


class StrModulePallas:
    """Shell wrapping a 'name' choice; forward returns the name."""

    def __init__(self, name):
        self.str = name
        # Run the (trivial) kernel exactly once at construction on a freshly
        # materialized encoding (safe to donate), and cache the device result.
        # forward() serves this cached array with zero per-call launch/DMA
        # cost, matching `return self.str` exactly.
        self._stored = _str_module_pallas(_encode_name(str(name)))

    def forward(self, *args, **kwargs):
        del args, kwargs  # forward(*args, **kwargs) ignores everything
        return self._stored

    def __call__(self, *args, **kwargs):
        return self.forward(*args, **kwargs)

    def __repr__(self):
        return "{}({})".format(self.__class__.__name__, self.str)


if __name__ == "__main__":
    # TODO(synk): returning an arbitrary Python object (a str) from a kernel
    # has no tensor equivalent; the name is round-tripped as int32 char codes.
    module = StrModulePallas("conv3x3")

    # Dummy forward args (ignored by the module, just like in PyTorch).
    key = jax.random.PRNGKey(0)
    x = jax.random.normal(key, (2, 4, 16, 16), dtype=jnp.float32)

    out = module.forward(x, extra_kwarg=123)
    out = jax.block_until_ready(out)

    decoded = _decode_name(out)
    assert decoded == "conv3x3", f"got {decoded!r}"

    # Second call exercises the zero-overhead cached path.
    out2 = jax.block_until_ready(module.forward(x))
    assert _decode_name(out2) == "conv3x3"

    print("KERNEL_OK")
</pallas_src>

<mosaic_0001>
module attributes {stable_mosaic.version = 11 : i64} {
  func.func @_str_module_kernel(%arg0: memref<8x128xi32, #tpu.memory_space<vmem>>, %arg1: memref<8x128xi32, #tpu.memory_space<vmem>>) attributes {dimension_semantics = [], scalar_prefetch = 0 : i64, scratch_operands = 0 : i64, tpu.core_type = #tpu.core_type<tc>} {
    %c0 = arith.constant 0 : index
    %c0_0 = arith.constant 0 : index
    %0 = vector.load %arg0[%c0, %c0_0] : memref<8x128xi32, #tpu.memory_space<vmem>>, vector<8x128xi32>
    %c0_1 = arith.constant 0 : index
    %c0_2 = arith.constant 0 : index
    %1 = vector.load %arg1[%c0_1, %c0_2] : memref<8x128xi32, #tpu.memory_space<vmem>>, vector<8x128xi32>
    tpu.vector_store %arg1[%c0_1, %c0_2], %0 {strides = array<i32>} : memref<8x128xi32, #tpu.memory_space<vmem>>, vector<8x128xi32>,
    return
  }
}

</mosaic_0001>

<llo_original>
// kernel: tpu_custom_call.1
$region0: #{tpu_custom_call.1}
  #allocation0 [shape = 'u32[]', space=smem, size = 0x4, offset = 0x4, fixed_abs, tag = 'smem constant byte address 0x4 - core index']
  #allocation1 [shape = 'u32[144,128]{1,0:T(1,128)}', space=vmem, size = 0x12000, scoped, tag = 'internal scratch']
  %s0 = inlined_call_operand.hbm [shape: s32[8,128], index: 0, kind: input, shape index: {}, may-alias: {0,1}]
  %s1 = inlined_call_operand.hbm [shape: s32[8,128], index: 1, kind: output, shape index: {}, may-alias: {0,1}]
  %s2 = sld [smem:[#allocation0]]
  $region18: #{tpu_custom_call.1} parent=0
    _
  %s4 = ssub.s32 1, %s2
  %s5 = scalar_select 0, %s4, %s2
  $region1: #{tpu_custom_call.1} parent=0
    #allocation2 [shape = 'u8[4096]{0}', space=vmem, size = 0x1000, scoped, tag = 'input window, operand 0, single buffered']
    #allocation3 [shape = 's32[1]{0}', space=sflag, size = 0x4, scoped, tag = 'scoped memory for tpu_custom_call.1']
    #allocation4 [shape = 's32[1]{0}', space=sflag, size = 0x4, scoped, tag = 'scoped memory for tpu_custom_call.1']
    #allocation5 [shape = 'u8[4096]{0}', space=vmem, size = 0x1000, scoped, tag = 'output window, operand 0, single buffered']
    %6 = vsyncpa [#allocation3], 0
    %7 = vsyncpa [#allocation4], 0
    // Predicated region
    $region2: #{tpu_custom_call.1} parent=1 // pred_check
      _
    $region3: #{tpu_custom_call.1} parent=1 // pred_check_branch
      %9 = sbr.rel (0) target = $region5
    $region4: #{tpu_custom_call.1} parent=1 // pred_region
      %s11 = ssub.s32 128, 128
      %12 = vsyncadd [#allocation3], %s11
      %s14 = sshll.u32 [#allocation2], 4
      %s15 = int_to_ptr.vmem [resolvable:$true] %s14
      %17 = dma.hbm_to_vmem [thread:$0]  %s0, 128, %s15, [#allocation3]
    $region5: #{tpu_custom_call.1} parent=1 // pred_fallthru
      _
    // Predicated region
    $region6: #{tpu_custom_call.1} parent=1 // pred_check
      _
    $region7: #{tpu_custom_call.1} parent=1 // pred_check_branch
      %19 = sbr.rel (0) target = $region9
    $region8: #{tpu_custom_call.1} parent=1 // pred_region
      %20 = dma.done [#allocation3], 128
    $region9: #{tpu_custom_call.1} parent=1 // pred_fallthru
      _
    %v21 = vld [vmem:[#allocation2] sm:$0xff]
    %22 = vst [vmem:[#allocation5] sm:$0xff] %v21
    // Predicated region
    $region10: #{tpu_custom_call.1} parent=1 // pred_check
      _
    $region11: #{tpu_custom_call.1} parent=1 // pred_check_branch
      %24 = sbr.rel (0) target = $region13
    $region12: #{tpu_custom_call.1} parent=1 // pred_region
      %s26 = ssub.s32 128, 128
      %27 = vsyncadd [#allocation4], %s26
      %s29 = sshll.u32 [#allocation5], 4
      %s30 = int_to_ptr.vmem [resolvable:$true] %s29
      %32 = dma.vmem_to_hbm [thread:$0]  %s30, 128, %s1, [#allocation4]
    $region13: #{tpu_custom_call.1} parent=1 // pred_fallthru
      _
    // Predicated region
    $region14: #{tpu_custom_call.1} parent=1 // pred_check
      _
    $region15: #{tpu_custom_call.1} parent=1 // pred_check_branch
      %34 = sbr.rel (0) target = $region17
    $region16: #{tpu_custom_call.1} parent=1 // pred_region
      %35 = dma.done [#allocation4], 128
    $region17: #{tpu_custom_call.1} parent=1 // pred_fallthru
      _
    %36 = vsyncpa [#allocation3], 1
    %37 = vsyncpa [#allocation4], 1

</llo_original>
